<compile_context>
chip_gen: v5e
topology: v5e:2x2
jax: 0.10.0
libtpu: 0.0.40
codegen_flags: <defaults>
</compile_context>

<pallas_src>
import math
from functools import partial

import jax
import jax.numpy as jnp
from jax.experimental import pallas as pl
from jax.experimental.pallas import tpu as pltpu

TM = 512                      # row tile for the generic fused matmul kernel


def _vmem_limit_bytes():
    # ~75% of physical VMEM: 48 MiB on v7x (64 MiB part), ~96 MiB on v5e/v6e (128 MiB parts).
    try:
        cap = int(pltpu.get_tpu_info().vmem_capacity_bytes)
    except Exception:
        cap = 64 * 1024 * 1024
    return int(min(cap * 3 // 4, 100 * 1024 * 1024))


_VMEM = _vmem_limit_bytes()


def _cparams(n_axes):
    return pltpu.CompilerParams(
        dimension_semantics=("parallel",) * n_axes,
        vmem_limit_bytes=_VMEM)


# ----------------------------------------------------------------------------
# Generic fused matmul:  (X @ W) * scale + shift  (+ ReLU)    [bf16 in, f32 acc]
# ----------------------------------------------------------------------------
def _mm_kernel(x_ref, w_ref, s_ref, b_ref, o_ref, *, relu):
    y = jnp.dot(x_ref[...], w_ref[...], preferred_element_type=jnp.float32)
    y = y * s_ref[...] + b_ref[...]
    if relu:
        y = jnp.maximum(y, 0.0)
    o_ref[...] = y.astype(o_ref.dtype)


@partial(jax.jit, static_argnames=("relu", "out_dtype"))
def matmul_fused(x, w, scale, shift, relu=False, out_dtype=jnp.bfloat16):
    # NOTE: every call site in this net has M <= TM or M % TM == 0 (no partial M tiles).
    M, K = x.shape
    N = w.shape[1]
    tm = min(TM, M)
    grid = (pl.cdiv(M, tm),)
    return pl.pallas_call(
        partial(_mm_kernel, relu=relu),
        out_shape=jax.ShapeDtypeStruct((M, N), out_dtype),
        grid=grid,
        in_specs=[
            pl.BlockSpec((tm, K), lambda i: (i, 0)),
            pl.BlockSpec((K, N), lambda i: (0, 0)),
            pl.BlockSpec((1, N), lambda i: (0, 0)),
            pl.BlockSpec((1, N), lambda i: (0, 0)),
        ],
        out_specs=pl.BlockSpec((tm, N), lambda i: (i, 0)),
        compiler_params=_cparams(1),
    )(x.astype(jnp.bfloat16), w.astype(jnp.bfloat16),
      scale.reshape(1, N).astype(jnp.float32),
      shift.reshape(1, N).astype(jnp.float32))


# ----------------------------------------------------------------------------
# Fused stride-1 conv3x3x3 + BN affine (+ residual) (+ ReLU).
# One grid step per batch: the padded activation is flattened over (D, H, W) so every
# tap is a contiguous row window of the flat buffer.  Taps are concatenated along the
# channel axis in VMEM to raise the MXU contraction depth (K = 9*Cin or 3*Cin).
# The output carries halo rows (hp >= H or wp >= W) that are sliced away outside.
# ----------------------------------------------------------------------------
def _conv3s1_kernel(x_ref, w_ref, s_ref, b_ref, *rest,
                    Wp, HpWp, R, taps, relu, has_res):
    if has_res:
        r_ref, o_ref = rest
    else:
        (o_ref,) = rest
    G = w_ref.shape[0]
    acc = None
    for g in range(G):
        if taps == 9:                      # one group per kd: concat the 9 (kh, kw) taps
            offs = [g * HpWp + kh * Wp + kw for kh in range(3) for kw in range(3)]
        else:                              # one group per (kd, kh): concat the 3 kw taps
            kd, kh = divmod(g, 3)
            offs = [kd * HpWp + kh * Wp + kw for kw in range(3)]
        slab = jnp.concatenate([x_ref[0, o:o + R, :] for o in offs], axis=-1)
        part = jnp.dot(slab, w_ref[g], preferred_element_type=jnp.float32)
        acc = part if acc is None else acc + part
    y = acc * s_ref[...] + b_ref[...]
    if has_res:
        y = y + r_ref[0].astype(jnp.float32)
    if relu:
        y = jnp.maximum(y, 0.0)
    o_ref[0] = y.astype(o_ref.dtype)


@partial(jax.jit, static_argnames=("relu",))
def conv3x3x3_s1(x, w, scale, shift, relu=True, residual=None):
    # x: (n, D, H, W, C) ; w: (27, C, Cout) with tap order (kd, kh, kw)
    n, D, H, W, C = x.shape
    Cout = w.shape[2]
    Hp, Wp = H + 2, W + 2
    Dp = D + 3                              # (1, 2) depth pad so all tap windows stay in range
    HpWp = Hp * Wp
    R = D * HpWp                            # output rows per batch (incl. halo rows)
    xp = jnp.pad(x.astype(jnp.bfloat16),
                 ((0, 0), (1, 2), (1, 1), (1, 1), (0, 0))).reshape(n, Dp * HpWp, C)

    # Tap grouping: K = 9*C (3 dots) for C <= 128, K = 3*C (9 dots) for larger C
    # (caps the in-VMEM im2col slab on v7x's 64 MiB part).
    if C <= 128:
        G, taps = 3, 9
    else:
        G, taps = 9, 3
    wg = w.reshape(G, taps * C, Cout).astype(jnp.bfloat16)

    args = [xp, wg,
            scale.reshape(1, Cout).astype(jnp.float32),
            shift.reshape(1, Cout).astype(jnp.float32)]
    in_specs = [
        pl.BlockSpec((1, Dp * HpWp, C), lambda b: (b, 0, 0)),
        pl.BlockSpec((G, taps * C, Cout), lambda b: (0, 0, 0)),
        pl.BlockSpec((1, Cout), lambda b: (0, 0)),
        pl.BlockSpec((1, Cout), lambda b: (0, 0)),
    ]
    has_res = residual is not None
    if has_res:
        rp = jnp.pad(residual.astype(jnp.bfloat16),
                     ((0, 0), (0, 0), (0, 2), (0, 2), (0, 0))).reshape(n, R, Cout)
        args.append(rp)
        in_specs.append(pl.BlockSpec((1, R, Cout), lambda b: (b, 0, 0)))

    out = pl.pallas_call(
        partial(_conv3s1_kernel, Wp=Wp, HpWp=HpWp, R=R, taps=taps,
                relu=relu, has_res=has_res),
        out_shape=jax.ShapeDtypeStruct((n, R, Cout), jnp.bfloat16),
        grid=(n,),
        in_specs=in_specs,
        out_specs=pl.BlockSpec((1, R, Cout), lambda b: (b, 0, 0)),
        compiler_params=_cparams(1),
    )(*args)
    # TODO(synk): the halo-slice below + the next conv's jnp.pad are extra HBM passes;
    #             keeping a padded inter-conv layout would remove them.
    return out.reshape(n, D, Hp, Wp, Cout)[:, :, :H, :W, :]


# Stride-2 conv3x3x3 fallback (only 4 instances in the net): XLA im2col + fused matmul.
@partial(jax.jit, static_argnames=("relu",))
def conv3x3x3_s2(x, w, scale, shift, relu=True):
    n, D, H, W, C = x.shape
    Cout = w.shape[2]
    Do, Ho, Wo = (D - 1) // 2 + 1, (H - 1) // 2 + 1, (W - 1) // 2 + 1
    xp = jnp.pad(x.astype(jnp.bfloat16), ((0, 0), (1, 1), (1, 1), (1, 1), (0, 0)))
    cols = []
    for kd in range(3):
        for kh in range(3):
            for kw in range(3):
                cols.append(xp[:, kd:kd + 2 * (Do - 1) + 1:2,
                               kh:kh + 2 * (Ho - 1) + 1:2,
                               kw:kw + 2 * (Wo - 1) + 1:2, :])
    patches = jnp.concatenate(cols, axis=-1).reshape(n * Do * Ho * Wo, 27 * C)
    y = matmul_fused(patches, w.reshape(27 * C, Cout), scale, shift, relu=relu)
    return y.reshape(n, Do, Ho, Wo, Cout)


def conv3x3x3(x, w, scale, shift, stride=1, relu=True, residual=None):
    if stride == 1:
        return conv3x3x3_s1(x, w, scale, shift, relu=relu, residual=residual)
    assert residual is None
    return conv3x3x3_s2(x, w, scale, shift, relu=relu)


def conv1x1(x, w, scale, shift, stride=1, relu=False):
    if stride > 1:
        x = x[:, ::stride, ::stride, ::stride, :]
    n, D, H, W, c = x.shape
    cout = w.shape[1]
    y = matmul_fused(x.reshape(-1, c), w, scale, shift, relu=relu)
    return y.reshape(n, D, H, W, cout)


@partial(jax.jit, static_argnames=("relu",))
def deconv2x2(x, w, fscale, fshift, relu=True):
    # ConvTranspose3d(kernel=2, stride=2) + folded bias/BN + ReLU via one fused matmul.
    # TODO(synk): the (2,2,2) spatial interleave below is still an XLA transpose.
    n, D, H, W, c = x.shape
    cout = w.shape[1] // 8
    y = matmul_fused(x.reshape(-1, c), w, fscale, fshift, relu=relu)
    y = y.reshape(n, D, H, W, 2, 2, 2, cout)
    y = y.transpose(0, 1, 4, 2, 5, 3, 6, 7).reshape(n, 2 * D, 2 * H, 2 * W, cout)
    return y


# ----------------------------------------------------------------------------
# Fused dual-attention modules (one pallas_call each, grid over batch)
# ----------------------------------------------------------------------------
def _pam_kernel(x_ref, w_ref, b_ref, g_ref, o_ref, *, c8):
    x = x_ref[0]                                                     # (S, C) bf16
    qkv = jnp.dot(x, w_ref[...], preferred_element_type=jnp.float32) + b_ref[...]
    q = qkv[:, :c8].astype(jnp.bfloat16)                             # (S, C//8)
    k = qkv[:, c8:2 * c8].astype(jnp.bfloat16)
    v = qkv[:, 2 * c8:].astype(jnp.bfloat16)                         # (S, C)
    e = jax.lax.dot_general(q, k, (((1,), (1,)), ((), ())),
                            preferred_element_type=jnp.float32)      # (S, S)
    e = e - jnp.max(e, axis=-1, keepdims=True)
    p = jnp.exp(e)
    inv = pl.reciprocal(jnp.sum(p, axis=-1, keepdims=True), approx=True)
    attn = (p * inv).astype(jnp.bfloat16)
    out = jnp.dot(attn, v, preferred_element_type=jnp.float32)       # (S, C)
    y = g_ref[0, 0] * out + x.astype(jnp.float32)
    o_ref[0] = y.astype(o_ref.dtype)


@jax.jit
def pam_module(xm, wq, bq, wk, bk, wv, bv, gamma):
    # TODO(synk): softmax materializes (S,S) in VMEM; flash-tile the kv axis for S >= 2048.
    n, S, C = xm.shape
    c8 = wq.shape[1]
    nqkv = 2 * c8 + C
    wqkv = jnp.concatenate([wq, wk, wv], axis=1).astype(jnp.bfloat16)   # (C, 2*c8 + C)
    bqkv = jnp.concatenate([bq, bk, bv]).reshape(1, nqkv).astype(jnp.float32)
    g = jnp.reshape(gamma, (1, 1)).astype(jnp.float32)
    return pl.pallas_call(
        partial(_pam_kernel, c8=c8),
        out_shape=jax.ShapeDtypeStruct((n, S, C), jnp.bfloat16),
        grid=(n,),
        in_specs=[
            pl.BlockSpec((1, S, C), lambda b: (b, 0, 0)),
            pl.BlockSpec((C, nqkv), lambda b: (0, 0)),
            pl.BlockSpec((1, nqkv), lambda b: (0, 0)),
            pl.BlockSpec((1, 1), lambda b: (0, 0)),
        ],
        out_specs=pl.BlockSpec((1, S, C), lambda b: (b, 0, 0)),
        compiler_params=_cparams(1),
    )(xm, wqkv, bqkv, g)


def _cam_kernel(x_ref, g_ref, o_ref):
    x = x_ref[0]                                                     # (S, C) bf16
    e = jax.lax.dot_general(x, x, (((0,), (0,)), ((), ())),
                            preferred_element_type=jnp.float32)      # (C, C), bf16 MXU
    en = jnp.max(e, axis=-1, keepdims=True) - e
    en = en - jnp.max(en, axis=-1, keepdims=True)
    p = jnp.exp(en)
    inv = pl.reciprocal(jnp.sum(p, axis=-1, keepdims=True), approx=True)
    attn = (p * inv).astype(jnp.bfloat16)
    out = jax.lax.dot_general(x, attn, (((1,), (1,)), ((), ())),
                              preferred_element_type=jnp.float32)    # (S, C)
    y = g_ref[0, 0] * out + x.astype(jnp.float32)
    o_ref[0] = y.astype(o_ref.dtype)


@jax.jit
def cam_module(xm, gamma):
    n, S, C = xm.shape
    g = jnp.reshape(gamma, (1, 1)).astype(jnp.float32)
    return pl.pallas_call(
        _cam_kernel,
        out_shape=jax.ShapeDtypeStruct((n, S, C), jnp.bfloat16),
        grid=(n,),
        in_specs=[pl.BlockSpec((1, S, C), lambda b: (b, 0, 0)),
                  pl.BlockSpec((1, 1), lambda b: (0, 0))],
        out_specs=pl.BlockSpec((1, S, C), lambda b: (b, 0, 0)),
        compiler_params=_cparams(1),
    )(xm, g)


# ----------------------------------------------------------------------------
# Network building blocks
# ----------------------------------------------------------------------------
def _ones(n):
    return jnp.ones((n,), jnp.float32)


def _zeros(n):
    return jnp.zeros((n,), jnp.float32)


def basic_block(x, p):
    s = p['stride']
    out = conv3x3x3(x, p['w1'], *p['bn1'], stride=s, relu=True)
    if 'dsw' in p:
        identity = conv1x1(x, p['dsw'], *p['dsbn'], stride=s, relu=False)
    else:
        identity = x
    # conv2 + bn2 + residual-add + ReLU fused into one Pallas call
    out = conv3x3x3(out, p['w2'], *p['bn2'], stride=1, relu=True, residual=identity)
    return out


def seq_blocks(x, blocks):
    for p in blocks:
        x = basic_block(x, p)
    return x


def danet_head(x, p):
    n, D, H, W, _ = x.shape
    S = D * H * W

    feat1 = conv3x3x3(x, p['w5a'], *p['bn5a'], relu=True)
    inter = feat1.shape[-1]
    sa = pam_module(feat1.reshape(n, S, inter),
                    p['pam']['wq'], p['pam']['bq'],
                    p['pam']['wk'], p['pam']['bk'],
                    p['pam']['wv'], p['pam']['bv'],
                    p['pam']['gamma']).reshape(feat1.shape)
    sa_conv = conv3x3x3(sa, p['w51'], *p['bn51'], relu=True)

    feat2 = conv3x3x3(x, p['w5c'], *p['bn5c'], relu=True)
    sc = cam_module(feat2.reshape(n, S, inter), p['cam_gamma']).reshape(feat2.shape)
    sc_conv = conv3x3x3(sc, p['w52'], *p['bn52'], relu=True)

    feat_sum = sa_conv + sc_conv
    # Dropout3d(0.1) in eval mode == identity
    cout = p['w8'].shape[1]
    return conv1x1(feat_sum, p['w8'], _ones(cout), p['b8'])


def up_block(x, p):
    # ConvTranspose3d(k=2, s=2, bias) + norm + ReLU folded into one fused matmul
    scale, shift = p['bn']
    fscale = jnp.tile(scale, 8)
    fshift = jnp.tile(scale * p['bias'] + shift, 8)
    return deconv2x2(x, p['w'], fscale, fshift, relu=True)


# ----------------------------------------------------------------------------
# Deterministic parameter construction (shapes follow DAResNet34.__init__)
# ----------------------------------------------------------------------------
class PGen:
    def __init__(self, seed=0):
        self.key = jax.random.PRNGKey(seed)
        self.n = 0

    def _next(self, shape, scale):
        self.n += 1
        return scale * jax.random.normal(jax.random.fold_in(self.key, self.n),
                                         shape, jnp.float32)

    def conv3(self, cout, cin):
        w = self._next((3, 3, 3, cin, cout), 1.0 / math.sqrt(27 * cin))
        return w.reshape(27, cin, cout).astype(jnp.bfloat16)

    def conv1(self, cout, cin):
        return self._next((cin, cout), 1.0 / math.sqrt(cin)).astype(jnp.bfloat16)

    def deconv2(self, cout, cin):
        w = self._next((cin, 2, 2, 2, cout), 1.0 / math.sqrt(8 * cin))
        return w.reshape(cin, 8 * cout).astype(jnp.bfloat16)

    def bias(self, c):
        return self._next((c,), 0.1)

    def bn(self, c):
        scale = 1.0 + self._next((c,), 0.05)
        shift = self._next((c,), 0.05)
        return scale, shift


def make_params(k=16, segClasses=2, seed=0):
    pg = PGen(seed)
    P = {}
    P['l0_w1'] = pg.conv3(k, 1); P['l0_bn1'] = pg.bn(k)
    P['l0_w2'] = pg.conv3(k, k); P['l0_bn2'] = pg.bn(k)

    def block(ci, co, stride=1):
        blk = {'stride': stride,
               'w1': pg.conv3(co, ci), 'bn1': pg.bn(co),
               'w2': pg.conv3(co, co), 'bn2': pg.bn(co)}
        if stride != 1 or ci != co:
            blk['dsw'] = pg.conv1(co, ci)
            blk['dsbn'] = pg.bn(co)
        return blk

    def layer(inp, planes, blocks, stride):
        ps = [block(inp, planes, stride)]
        for _ in range(1, blocks):
            ps.append(block(planes, planes, 1))
        return ps

    P['layer1'] = layer(k, k, 3, 1)
    P['layer2'] = layer(k, 2 * k, 4, 2)
    P['layer3'] = layer(2 * k, 4 * k, 6, 2)
    P['layer4'] = layer(4 * k, 8 * k, 3, 2)

    C = 8 * k
    inter = C // 4
    P['class4'] = {
        'w5a': pg.conv3(inter, C), 'bn5a': pg.bn(inter),
        'w5c': pg.conv3(inter, C), 'bn5c': pg.bn(inter),
        'pam': {'wq': pg.conv1(inter // 8, inter), 'bq': pg.bias(inter // 8),
                'wk': pg.conv1(inter // 8, inter), 'bk': pg.bias(inter // 8),
                'wv': pg.conv1(inter, inter), 'bv': pg.bias(inter),
                'gamma': jnp.float32(0.5)},
        'cam_gamma': jnp.float32(0.5),
        'w51': pg.conv3(inter, inter), 'bn51': pg.bn(inter),
        'w52': pg.conv3(inter, inter), 'bn52': pg.bn(inter),
        'w8': pg.conv1(C, inter), 'b8': pg.bias(C),
    }

    def up(cin, cout):
        return {'w': pg.deconv2(cout, cin), 'bias': pg.bias(cout), 'bn': pg.bn(cout)}

    P['up3'] = up(8 * k, 8 * k)
    P['class3_block'] = block(4 * k + 8 * k, 8 * k)
    P['class3_cbr_w'] = pg.conv3(4 * k, 8 * k); P['class3_cbr_bn'] = pg.bn(4 * k)
    P['up2'] = up(4 * k, 4 * k)
    P['class2_block'] = block(2 * k + 4 * k, 4 * k)
    P['class2_cbr_w'] = pg.conv3(2 * k, 4 * k); P['class2_cbr_bn'] = pg.bn(2 * k)
    P['up1'] = up(2 * k, 2 * k)
    P['class1_block'] = block(k + 2 * k, 2 * k)
    P['class1_up'] = up(2 * k, k)
    P['class1_w'] = pg.conv3(segClasses, k)
    return P


# ----------------------------------------------------------------------------
# Full forward pass (mirrors DAResNet34.forward)
# ----------------------------------------------------------------------------
def daresnet34_forward(x_ncdhw, P):
    x = jnp.transpose(x_ncdhw, (0, 2, 3, 4, 1)).astype(jnp.bfloat16)   # -> NDHWC bf16

    # layer0
    x = conv3x3x3(x, P['l0_w1'], *P['l0_bn1'], stride=2, relu=True)
    x = conv3x3x3(x, P['l0_w2'], *P['l0_bn2'], stride=1, relu=True)

    x1 = seq_blocks(x, P['layer1'])
    x2 = seq_blocks(x1, P['layer2'])
    x3 = seq_blocks(x2, P['layer3'])
    x4 = danet_head(seq_blocks(x3, P['layer4']), P['class4'])

    # decoder
    x = jnp.concatenate([up_block(x4, P['up3']), x3], axis=-1)
    x = basic_block(x, P['class3_block'])
    x = conv3x3x3(x, P['class3_cbr_w'], *P['class3_cbr_bn'], relu=True)

    x = jnp.concatenate([up_block(x, P['up2']), x2], axis=-1)
    x = basic_block(x, P['class2_block'])
    x = conv3x3x3(x, P['class2_cbr_w'], *P['class2_cbr_bn'], relu=True)

    x = jnp.concatenate([up_block(x, P['up1']), x1], axis=-1)
    x = basic_block(x, P['class1_block'])
    x = up_block(x, P['class1_up'])
    nseg = P['class1_w'].shape[2]
    y = conv3x3x3(x, P['class1_w'], _ones(nseg), _zeros(nseg), relu=False)

    return {'y': jnp.transpose(y.astype(jnp.float32), (0, 4, 1, 2, 3))}   # NCDHW f32


if __name__ == "__main__":
    key = jax.random.PRNGKey(0)
    # small but consistent: batch=2, 1 input channel, 16^3 volume (divisible by 16)
    x = jax.random.normal(key, (2, 1, 16, 16, 16), jnp.float32)
    params = make_params(k=16, segClasses=2, seed=0)
    out = daresnet34_forward(x, params)
    y = jax.block_until_ready(out['y'])
    assert y.shape == (2, 2, 16, 16, 16)
    assert bool(jnp.all(jnp.isfinite(y)))
    print("KERNEL_OK")
</pallas_src>

<mosaic_0001>
module attributes {stable_mosaic.version = 11 : i64} {
  func.func @_mm_kernel(%arg0: i32, %arg1: memref<512x27xbf16, #tpu.memory_space<vmem>>, %arg2: memref<27x16xbf16, #tpu.memory_space<vmem>>, %arg3: memref<1x16xf32, #tpu.memory_space<vmem>>, %arg4: memref<1x16xf32, #tpu.memory_space<vmem>>, %arg5: memref<512x16xbf16, #tpu.memory_space<vmem>>) attributes {dimension_semantics = [#tpu.dimension_semantics<parallel>], iteration_bounds = array<i64: 2>, scalar_prefetch = 0 : i64, scratch_operands = 0 : i64, tpu.core_type = #tpu.core_type<tc>, window_params = [{transform_indices = @transform_0, window_bounds = array<i64: 512, 27>}, {pipeline_mode = #tpu.pipeline_mode<synchronous>, transform_indices = @transform_1, window_bounds = array<i64: 27, 16>}, {pipeline_mode = #tpu.pipeline_mode<synchronous>, transform_indices = @transform_2, window_bounds = array<i64: 1, 16>}, {pipeline_mode = #tpu.pipeline_mode<synchronous>, transform_indices = @transform_3, window_bounds = array<i64: 1, 16>}, {transform_indices = @transform_4, window_bounds = array<i64: 512, 16>}]} {
    %c0 = arith.constant 0 : index
    %c0_0 = arith.constant 0 : index
    %0 = vector.load %arg1[%c0, %c0_0] : memref<512x27xbf16, #tpu.memory_space<vmem>>, vector<512x27xbf16>
    %c0_1 = arith.constant 0 : index
    %c0_2 = arith.constant 0 : index
    %1 = vector.load %arg2[%c0_1, %c0_2] : memref<27x16xbf16, #tpu.memory_space<vmem>>, vector<27x16xbf16>
    %cst = arith.constant dense<0.000000e+00> : vector<512x16xf32>
    %2 = tpu.matmul %0, %1, %cst {dimension_numbers = #tpu.dot_dimension_numbers<[1], [0], [0], [1], [0, 0, 1, 1], [], []>} : vector<512x27xbf16>, vector<27x16xbf16>, vector<512x16xf32> -> vector<512x16xf32>
    %c0_3 = arith.constant 0 : index
    %c0_4 = arith.constant 0 : index
    %3 = vector.load %arg3[%c0_3, %c0_4] : memref<1x16xf32, #tpu.memory_space<vmem>>, vector<1x16xf32>
    %4 = vector.broadcast %3 : vector<1x16xf32> to vector<512x16xf32>
    %5 = arith.mulf %2, %4 : vector<512x16xf32>
    %c0_5 = arith.constant 0 : index
    %c0_6 = arith.constant 0 : index
    %6 = vector.load %arg4[%c0_5, %c0_6] : memref<1x16xf32, #tpu.memory_space<vmem>>, vector<1x16xf32>
    %7 = vector.broadcast %6 : vector<1x16xf32> to vector<512x16xf32>
    %8 = arith.addf %5, %7 : vector<512x16xf32>
    %cst_7 = arith.constant 0.000000e+00 : f32
    %9 = vector.broadcast %cst_7 : f32 to vector<512x16xf32>
    %10 = arith.maximumf %8, %9 : vector<512x16xf32>
    %11 = arith.truncf %10 : vector<512x16xf32> to vector<512x16xbf16>
    %c0_8 = arith.constant 0 : index
    %c0_9 = arith.constant 0 : index
    %12 = vector.load %arg5[%c0_8, %c0_9] : memref<512x16xbf16, #tpu.memory_space<vmem>>, vector<512x16xbf16>
    tpu.vector_store %arg5[%c0_8, %c0_9], %11 {strides = array<i32>} : memref<512x16xbf16, #tpu.memory_space<vmem>>, vector<512x16xbf16>,
    return
  }
  func.func @transform_0(%arg0: i32) -> (i32, i32) {
    %c0_i32 = arith.constant 0 : i32
    %c0_i32_0 = arith.constant 0 : i32
    return %arg0, %c0_i32 : i32, i32
  }
  func.func @transform_1(%arg0: i32) -> (i32, i32) {
    %c0_i32 = arith.constant 0 : i32
    %c0_i32_0 = arith.constant 0 : i32
    %c0_i32_1 = arith.constant 0 : i32
    return %c0_i32, %c0_i32_0 : i32, i32
  }
  func.func @transform_2(%arg0: i32) -> (i32, i32) {
    %c0_i32 = arith.constant 0 : i32
    %c0_i32_0 = arith.constant 0 : i32
    %c0_i32_1 = arith.constant 0 : i32
    return %c0_i32, %c0_i32_0 : i32, i32
  }
  func.func @transform_3(%arg0: i32) -> (i32, i32) {
    %c0_i32 = arith.constant 0 : i32
    %c0_i32_0 = arith.constant 0 : i32
    %c0_i32_1 = arith.constant 0 : i32
    return %c0_i32, %c0_i32_0 : i32, i32
  }
  func.func @transform_4(%arg0: i32) -> (i32, i32) {
    %c0_i32 = arith.constant 0 : i32
    %c0_i32_0 = arith.constant 0 : i32
    return %arg0, %c0_i32 : i32, i32
  }
}

</mosaic_0001>

<llo_original>
// kernel: matmul_fused.1
$region0: #{matmul_fused.1}
  #allocation0 [shape = 'u32[]', space=smem, size = 0x4, offset = 0x4, fixed_abs, tag = 'smem constant byte address 0x4 - core index']
  #allocation1 [shape = 'u32[72,128]{1,0:T(1,128)}', space=vmem, size = 0x9000, scoped, tag = 'internal scratch']
  %s0 = inlined_call_operand.vmem [shape: bf16[1024,27], index: 0, kind: input, shape index: {}]
  %s1 = inlined_call_operand.vmem [shape: bf16[27,16], index: 1, kind: input, shape index: {}]
  %s2 = inlined_call_operand.vmem [shape: f32[1,16], index: 2, kind: input, shape index: {}]
  %s3 = inlined_call_operand.vmem [shape: f32[1,16], index: 3, kind: input, shape index: {}]
  %s4 = inlined_call_operand.vmem [shape: bf16[1024,16], index: 4, kind: output, shape index: {}]
  %s5 = sld [smem:[#allocation0]]
  $region49: #{matmul_fused.1} parent=0
    _
  %s7 = ssub.s32 1, %s5
  %s8 = scalar_select 0, %s7, %s5
  loop: start=0, step=1, limit=4
  $region2: #{matmul_fused.1} parent=0 // loop_pre_header
    _
  $region3: #{matmul_fused.1} parent=0 // loop_header
    %s10 = sphi 0, %s14
    %p11 = scmp.ge.s32.totalorder %s10, 4
    %s20 = sphi 0, %s22
    %s23 = sphi 0, %s20
    %s24 = sphi 0, %s23
    %s40 = sphi 0, %s24
    %s44 = sphi 0, %s44
    %s46 = sphi 0, %s44
    %s47 = sphi 0, %s46
    %s61 = sphi 0, %s47
    %s65 = sphi 0, %s65
    %s67 = sphi 0, %s65
    %s68 = sphi 0, %s67
    %s82 = sphi 0, %s68
    %s86 = sphi 0, %s86
    %s88 = sphi 0, %s86
    %s89 = sphi 0, %s88
    %s103 = sphi 0, %s89
    %s109 = sphi 0, %s111
    %s112 = sphi 0, %s109
    %s113 = sphi 0, %s112
    %s129 = sphi 0, %s113
  $region4: #{matmul_fused.1} parent=0 // loop_header_branch
    %13 = sbr.rel (%p11) target = $region8
  $region5: #{matmul_fused.1} parent=0 // loop_body
    %s15 = ssub.s32 %s10, 1
    %s16 = ssub.s32 %s10, 2
    %s17 = sadd.s32 %s10, 1
    %s18 = ssub.s32 %s10, %s17
    %p19 = scmp.eq.s32.totalorder %s18, 0
    %s21 = sadd.s32 %s20, 1
    %s22 = scalar_select %p19, %s20, %s21
    %p25 = pneg %p19
    %p26 = scmp.eq.s32.totalorder %s10, 1
    %p27 = por %p25, %p26
    %p28 = scmp.ne.s32.totalorder %s20, %s23
    %p29 = scmp.eq.s32.totalorder %s10, 0
    %p30 = por %p28, %p29
    %p31 = scmp.ne.s32.totalorder %s20, %s23
    %p32 = scmp.eq.s32.totalorder %s15, 1
    %p33 = por %p31, %p32
    %p34 = scmp.ne.s32.totalorder %s23, %s24
    %p35 = scmp.eq.s32.totalorder %s15, 0
    %p36 = por %p34, %p35
    %p37 = scmp.ne.s32.totalorder %s23, %s24
    %p38 = scmp.eq.s32.totalorder %s16, 1
    %p39 = por %p37, %p38
    %p41 = scmp.ne.s32.totalorder %s24, %s40
    %p42 = scmp.eq.s32.totalorder %s16, 0
    %p43 = por %p41, %p42
    %s45 = sadd.s32 %s44, 1
    %p48 = scmp.eq.s32.totalorder %s10, 1
    %p49 = scmp.ne.s32.totalorder %s44, %s46
    %p50 = scmp.eq.s32.totalorder %s10, 0
    %p51 = por %p49, %p50
    %p52 = scmp.ne.s32.totalorder %s44, %s46
    %p53 = scmp.eq.s32.totalorder %s15, 1
    %p54 = por %p52, %p53
    %p55 = scmp.ne.s32.totalorder %s46, %s47
    %p56 = scmp.eq.s32.totalorder %s15, 0
    %p57 = por %p55, %p56
    %p58 = scmp.ne.s32.totalorder %s46, %s47
    %p59 = scmp.eq.s32.totalorder %s16, 1
    %p60 = por %p58, %p59
    %p62 = scmp.ne.s32.totalorder %s47, %s61
    %p63 = scmp.eq.s32.totalorder %s16, 0
    %p64 = por %p62, %p63
    %s66 = sadd.s32 %s65, 1
    %p69 = scmp.eq.s32.totalorder %s10, 1
    %p70 = scmp.ne.s32.totalorder %s65, %s67
    %p71 = scmp.eq.s32.totalorder %s10, 0
    %p72 = por %p70, %p71
    %p73 = scmp.ne.s32.totalorder %s65, %s67
    %p74 = scmp.eq.s32.totalorder %s15, 1
    %p75 = por %p73, %p74
    %p76 = scmp.ne.s32.totalorder %s67, %s68
    %p77 = scmp.eq.s32.totalorder %s15, 0
    %p78 = por %p76, %p77
    %p79 = scmp.ne.s32.totalorder %s67, %s68
    %p80 = scmp.eq.s32.totalorder %s16, 1
    %p81 = por %p79, %p80
    %p83 = scmp.ne.s32.totalorder %s68, %s82
    %p84 = scmp.eq.s32.totalorder %s16, 0
    %p85 = por %p83, %p84
    %s87 = sadd.s32 %s86, 1
    %p90 = scmp.eq.s32.totalorder %s10, 1
    %p91 = scmp.ne.s32.totalorder %s86, %s88
    %p92 = scmp.eq.s32.totalorder %s10, 0
    %p93 = por %p91, %p92
    %p94 = scmp.ne.s32.totalorder %s86, %s88
    %p95 = scmp.eq.s32.totalorder %s15, 1
    %p96 = por %p94, %p95
    %p97 = scmp.ne.s32.totalorder %s88, %s89
    %p98 = scmp.eq.s32.totalorder %s15, 0
    %p99 = por %p97, %p98
    %p100 = scmp.ne.s32.totalorder %s88, %s89
    %p101 = scmp.eq.s32.totalorder %s16, 1
    %p102 = por %p100, %p101
    %p104 = scmp.ne.s32.totalorder %s89, %s103
    %p105 = scmp.eq.s32.totalorder %s16, 0
    %p106 = por %p104, %p105
    %s107 = ssub.s32 %s10, %s17
    %p108 = scmp.eq.s32.totalorder %s107, 0
    %s110 = sadd.s32 %s109, 1
    %s111 = scalar_select %p108, %s109, %s110
    %p114 = pneg %p108
    %p115 = scmp.eq.s32.totalorder %s10, 1
    %p116 = por %p114, %p115
    %p117 = scmp.ne.s32.totalorder %s109, %s112
    %p118 = scmp.eq.s32.totalorder %s10, 0
    %p119 = por %p117, %p118
    %p120 = scmp.ne.s32.totalorder %s109, %s112
    %p121 = scmp.eq.s32.totalorder %s15, 1
    %p122 = por %p120, %p121
    %p123 = scmp.ne.s32.totalorder %s112, %s113
    %p124 = scmp.eq.s32.totalorder %s15, 0
    %p125 = por %p123, %p124
    %p126 = scmp.ne.s32.totalorder %s112, %s113
    %p127 = scmp.eq.s32.totalorder %s16, 1
    %p128 = por %p126, %p127
    %p130 = scmp.ne.s32.totalorder %s113, %s129
    %p131 = scmp.eq.s32.totalorder %s16, 0
    %p132 = por %p130, %p131
    %p133 = scmp.le.s32.totalorder 1, %s10
    %p134 = scmp.lt.s32.totalorder %s10, 3
    %p135 = pnand %p133, %p134
    %p136 = pneg %p135
    // Predicated region
    $region9: #{matmul_fused.1} parent=5 // pred_check
      _
    $region10: #{matmul_fused.1} parent=5 // pred_check_branch
      %138 = sbr.rel (%p135) target = $region12
    $region11: #{matmul_fused.1} parent=5 // pred_region
      %s139 = ssub.s32 %s10, 1
      // Predicated region
      $region13: #{matmul_fused.1} parent=11 // pred_check
        %p140 = pneg %p57
      $region14: #{matmul_fused.1} parent=11 // pred_check_branch
        %142 = sbr.rel (%p140) target = $region16
      $region15: #{matmul_fused.1} parent=11 // pred_region
        _
      $region16: #{matmul_fused.1} parent=11 // pred_fallthru
        _
      // Predicated region
      $region17: #{matmul_fused.1} parent=11 // pred_check
        %p143 = pneg %p78
      $region18: #{matmul_fused.1} parent=11 // pred_check_branch
        %145 = sbr.rel (%p143) target = $region20
      $region19: #{matmul_fused.1} parent=11 // pred_region
        _
      $region20: #{matmul_fused.1} parent=11 // pred_fallthru
        _
      // Predicated region
      $region21: #{matmul_fused.1} parent=11 // pred_check
        %p146 = pneg %p99
      $region22: #{matmul_fused.1} parent=11 // pred_check_branch
        %148 = sbr.rel (%p146) target = $region24
      $region23: #{matmul_fused.1} parent=11 // pred_region
        _
      $region24: #{matmul_fused.1} parent=11 // pred_fallthru
        _
    $region12: #{matmul_fused.1} parent=5 // pred_fallthru
      _
    %p149 = scmp.lt.s32.totalorder %s10, 2
    // Predicated region
    $region25: #{matmul_fused.1} parent=5 // pred_check
      %p150 = pneg %p149
    $region26: #{matmul_fused.1} parent=5 // pred_check_branch
      %152 = sbr.rel (%p150) target = $region28
    $region27: #{matmul_fused.1} parent=5 // pred_region
      // Predicated region
      $region29: #{matmul_fused.1} parent=27 // pred_check
        %p153 = pneg %p30
      $region30: #{matmul_fused.1} parent=27 // pred_check_branch
        %155 = sbr.rel (%p153) target = $region32
      $region31: #{matmul_fused.1} parent=27 // pred_region
        %s156 = smul.u32 64, %s10
        %p157 = scmp.lt.s32.totalorder %s156, 127
        %s158 = scalar_select %p157, %s156, 127
        %s159 = smul.addr %s158, 4
        %s160 = scalar_lea.vmem %s0, %s159
        %s161 = smul.u32 64, %s10
      $region32: #{matmul_fused.1} parent=27 // pred_fallthru
        _
    $region28: #{matmul_fused.1} parent=5 // pred_fallthru
      _
    %p162 = scmp.le.s32.totalorder 1, %s10
    %p163 = scmp.lt.s32.totalorder %s10, 3
    %p164 = pnand %p162, %p163
    %p165 = pneg %p164
    // Predicated region
    $region33: #{matmul_fused.1} parent=5 // pred_check
      _
    $region34: #{matmul_fused.1} parent=5 // pred_check_branch
      %167 = sbr.rel (%p164) target = $region36
    $region35: #{matmul_fused.1} parent=5 // pred_region
      %s168 = ssub.s32 %s10, 1
      %s169 = smul.u32 64, %s15
      %p170 = scmp.lt.s32.totalorder %s169, 127
      %s171 = scalar_select %p170, %s169, 127
      %s172 = smul.addr %s171, 4
      %s173 = scalar_lea.vmem %s0, %s172
      %p174 = pneg %p36
      %p175 = pneg %p33
      %p176 = pneg %p57
      %p177 = pneg %p54
      %p178 = pneg %p78
      %p179 = pneg %p75
      %p180 = pneg %p99
      %p181 = pneg %p96
      %p182 = pneg %p125
      %p183 = pneg %p122
      %s184 = smul.u32 64, %s15
      %p185 = scmp.lt.s32.totalorder %s184, 127
      %s186 = scalar_select %p185, %s184, 127
      %s187 = smul.addr %s186, 4
      %s188 = scalar_lea.vmem %s4, %s187
      %s189 = smul.u32 64, %s15
      %p190 = scmp.lt.s32.totalorder %s189, 127
      %s191 = scalar_select %p190, %s189, 127
      %s192 = smul.addr %s191, 4
      %s193 = scalar_lea.vmem %s0, %s192
      %s194 = smul.u32 64, %s15
      %s195 = smul.u32 64, %s15
      %p196 = scmp.lt.s32.totalorder %s195, 127
      %s197 = scalar_select %p196, %s195, 127
      %s198 = smul.addr %s197, 4
      %s199 = scalar_lea.vmem %s4, %s198
      %s200 = smul.u32 64, %s15
      %v202 = vld [vmem:[%s193] sm:$0xf]
      %v203 = vld [vmem:[%s193 + $0x4] sm:$0xf]
      %v204 = vld [vmem:[%s193 + $0x8] sm:$0xf]
      %v205 = vld [vmem:[%s193 + $0xc] sm:$0xf]
      %v206 = vld [vmem:[%s193 + $0x10] sm:$0xf]
      %v207 = vld [vmem:[%s193 + $0x14] sm:$0xf]
      %v208 = vld [vmem:[%s193 + $0x18] sm:$0xf]
      %v209 = vld [vmem:[%s193 + $0x1c] sm:$0xf]
      %v210 = vld [vmem:[%s193 + $0x20] sm:$0xf]
      %v211 = vld [vmem:[%s193 + $0x24] sm:$0xf]
      %v212 = vld [vmem:[%s193 + $0x28] sm:$0xf]
      %v213 = vld [vmem:[%s193 + $0x2c] sm:$0xf]
      %v214 = vld [vmem:[%s193 + $0x30] sm:$0xf]
      %v215 = vld [vmem:[%s193 + $0x34] sm:$0xf]
      %v216 = vld [vmem:[%s193 + $0x38] sm:$0xf]
      %v217 = vld [vmem:[%s193 + $0x3c] sm:$0xf]
      %v218 = vld [vmem:[%s193 + $0x40] sm:$0xf]
      %v219 = vld [vmem:[%s193 + $0x44] sm:$0xf]
      %v220 = vld [vmem:[%s193 + $0x48] sm:$0xf]
      %v221 = vld [vmem:[%s193 + $0x4c] sm:$0xf]
      %v222 = vld [vmem:[%s193 + $0x50] sm:$0xf]
      %v223 = vld [vmem:[%s193 + $0x54] sm:$0xf]
      %v224 = vld [vmem:[%s193 + $0x58] sm:$0xf]
      %v225 = vld [vmem:[%s193 + $0x5c] sm:$0xf]
      %v226 = vld [vmem:[%s193 + $0x60] sm:$0xf]
      %v227 = vld [vmem:[%s193 + $0x64] sm:$0xf]
      %v228 = vld [vmem:[%s193 + $0x68] sm:$0xf]
      %v229 = vld [vmem:[%s193 + $0x6c] sm:$0xf]
      %v230 = vld [vmem:[%s193 + $0x70] sm:$0xf]
      %v231 = vld [vmem:[%s193 + $0x74] sm:$0xf]
      %v232 = vld [vmem:[%s193 + $0x78] sm:$0xf]
      %v233 = vld [vmem:[%s193 + $0x7c] sm:$0xf]
      %v234 = vld [vmem:[%s193 + $0x80] sm:$0xf]
      %v235 = vld [vmem:[%s193 + $0x84] sm:$0xf]
      %v236 = vld [vmem:[%s193 + $0x88] sm:$0xf]
      %v237 = vld [vmem:[%s193 + $0x8c] sm:$0xf]
      %v238 = vld [vmem:[%s193 + $0x90] sm:$0xf]
      %v239 = vld [vmem:[%s193 + $0x94] sm:$0xf]
      %v240 = vld [vmem:[%s193 + $0x98] sm:$0xf]
      %v241 = vld [vmem:[%s193 + $0x9c] sm:$0xf]
      %v242 = vld [vmem:[%s193 + $0xa0] sm:$0xf]
      %v243 = vld [vmem:[%s193 + $0xa4] sm:$0xf]
      %v244 = vld [vmem:[%s193 + $0xa8] sm:$0xf]
      %v245 = vld [vmem:[%s193 + $0xac] sm:$0xf]
      %v246 = vld [vmem:[%s193 + $0xb0] sm:$0xf]
      %v247 = vld [vmem:[%s193 + $0xb4] sm:$0xf]
      %v248 = vld [vmem:[%s193 + $0xb8] sm:$0xf]
      %v249 = vld [vmem:[%s193 + $0xbc] sm:$0xf]
      %v250 = vld [vmem:[%s193 + $0xc0] sm:$0xf]
      %v251 = vld [vmem:[%s193 + $0xc4] sm:$0xf]
      %v252 = vld [vmem:[%s193 + $0xc8] sm:$0xf]
      %v253 = vld [vmem:[%s193 + $0xcc] sm:$0xf]
      %v254 = vld [vmem:[%s193 + $0xd0] sm:$0xf]
      %v255 = vld [vmem:[%s193 + $0xd4] sm:$0xf]
      %v256 = vld [vmem:[%s193 + $0xd8] sm:$0xf]
      %v257 = vld [vmem:[%s193 + $0xdc] sm:$0xf]
      %v258 = vld [vmem:[%s193 + $0xe0] sm:$0xf]
      %v259 = vld [vmem:[%s193 + $0xe4] sm:$0xf]
      %v260 = vld [vmem:[%s193 + $0xe8] sm:$0xf]
      %v261 = vld [vmem:[%s193 + $0xec] sm:$0xf]
      %v262 = vld [vmem:[%s193 + $0xf0] sm:$0xf]
      %v263 = vld [vmem:[%s193 + $0xf4] sm:$0xf]
      %v264 = vld [vmem:[%s193 + $0xf8] sm:$0xf]
      %v265 = vld [vmem:[%s193 + $0xfc] sm:$0xf]
      %v266 = vld [vmem:[%s1] sm:$0xf]
      %v267 = vld [vmem:[%s1 + $0x4] sm:$0xf]
      %v268 = vld [vmem:[%s1 + $0x8] sm:$0xf]
      %v269 = vld [vmem:[%s1 + $0xc] sm:$0x3]
      %v334 = vunpack.c.l.b16 %v202
      %v335 = vunpack.c.l.b16 %v203
      %v336 = vunpack.c.l.b16 %v204
      %v337 = vunpack.c.l.b16 %v205
      %v338 = vunpack.c.l.b16 %v206
      %v339 = vunpack.c.l.b16 %v207
      %v340 = vunpack.c.l.b16 %v208
      %v341 = vunpack.c.l.b16 %v209
      %v342 = vunpack.c.l.b16 %v210
      %v343 = vunpack.c.l.b16 %v211
      %v344 = vunpack.c.l.b16 %v212
      %v345 = vunpack.c.l.b16 %v213
      %v346 = vunpack.c.l.b16 %v214
      %v347 = vunpack.c.l.b16 %v215
      %v348 = vunpack.c.l.b16 %v216
      %v349 = vunpack.c.l.b16 %v217
      %v350 = vunpack.c.l.b16 %v218
      %v351 = vunpack.c.l.b16 %v219
      %v352 = vunpack.c.l.b16 %v220
      %v353 = vunpack.c.l.b16 %v221
      %v354 = vunpack.c.l.b16 %v222
      %v355 = vunpack.c.l.b16 %v223
      %v356 = vunpack.c.l.b16 %v224
      %v357 = vunpack.c.l.b16 %v225
      %v358 = vunpack.c.l.b16 %v226
      %v359 = vunpack.c.l.b16 %v227
      %v360 = vunpack.c.l.b16 %v228
      %v361 = vunpack.c.l.b16 %v229
      %v362 = vunpack.c.l.b16 %v230
      %v363 = vunpack.c.l.b16 %v231
      %v364 = vunpack.c.l.b16 %v232
      %v365 = vunpack.c.l.b16 %v233
      %v366 = vunpack.c.l.b16 %v234
      %v367 = vunpack.c.l.b16 %v235
      %v368 = vunpack.c.l.b16 %v236
      %v369 = vunpack.c.l.b16 %v237
      %v370 = vunpack.c.l.b16 %v238
      %v371 = vunpack.c.l.b16 %v239
      %v372 = vunpack.c.l.b16 %v240
      %v373 = vunpack.c.l.b16 %v241
      %v374 = vunpack.c.l.b16 %v242
      %v375 = vunpack.c.l.b16 %v243
      %v376 = vunpack.c.l.b16 %v244
      %v377 = vunpack.c.l.b16 %v245
      %v378 = vunpack.c.l.b16 %v246
      %v379 = vunpack.c.l.b16 %v247
      %v380 = vunpack.c.l.b16 %v248
      %v381 = vunpack.c.l.b16 %v249
      %v382 = vunpack.c.l.b16 %v250
      %v383 = vunpack.c.l.b16 %v251
      %v384 = vunpack.c.l.b16 %v252
      %v385 = vunpack.c.l.b16 %v253
      %v386 = vunpack.c.l.b16 %v254
      %v387 = vunpack.c.l.b16 %v255
      %v388 = vunpack.c.l.b16 %v256
      %v389 = vunpack.c.l.b16 %v257
      %v390 = vunpack.c.l.b16 %v258
      %v391 = vunpack.c.l.b16 %v259
      %v392 = vunpack.c.l.b16 %v260
      %v393 = vunpack.c.l.b16 %v261
      %v394 = vunpack.c.l.b16 %v262
      %v395 = vunpack.c.l.b16 %v263
      %v396 = vunpack.c.l.b16 %v264
      %v397 = vunpack.c.l.b16 %v265
      %v398 = vpack.c.b16 %v335, %v334
      %v399 = vpack.c.b16 %v337, %v336
      %v400 = vpack.c.b16 %v339, %v338
      %v401 = vpack.c.b16 %v341, %v340
      %v402 = vpack.c.b16 %v343, %v342
      %v403 = vpack.c.b16 %v345, %v344
      %v404 = vpack.c.b16 %v347, %v346
      %v405 = vpack.c.b16 %v349, %v348
      %v406 = vpack.c.b16 %v351, %v350
      %v407 = vpack.c.b16 %v353, %v352
      %v408 = vpack.c.b16 %v355, %v354
      %v409 = vpack.c.b16 %v357, %v356
      %v410 = vpack.c.b16 %v359, %v358
      %v411 = vpack.c.b16 %v361, %v360
      %v412 = vpack.c.b16 %v363, %v362
      %v413 = vpack.c.b16 %v365, %v364
      %v414 = vpack.c.b16 %v367, %v366
      %v415 = vpack.c.b16 %v369, %v368
      %v416 = vpack.c.b16 %v371, %v370
      %v417 = vpack.c.b16 %v373, %v372
      %v418 = vpack.c.b16 %v375, %v374
      %v419 = vpack.c.b16 %v377, %v376
      %v420 = vpack.c.b16 %v379, %v378
      %v421 = vpack.c.b16 %v381, %v380
      %v422 = vpack.c.b16 %v383, %v382
      %v423 = vpack.c.b16 %v385, %v384
      %v424 = vpack.c.b16 %v387, %v386
      %v425 = vpack.c.b16 %v389, %v388
      %v426 = vpack.c.b16 %v391, %v390
      %v427 = vpack.c.b16 %v393, %v392
      %v428 = vpack.c.b16 %v395, %v394
      %v429 = vpack.c.b16 %v397, %v396
      %v434 = vunpack.c.l.b16 %v266
      %v435 = vunpack.c.l.b16 %v267
      %v436 = vunpack.c.l.b16 %v268
      %v437 = vunpack.c.l.b16 %v269
      %v438 = vpack.c.b16 %v435, %v434
      %v439 = vpack.c.b16 %v437, %v436
      %vm441 = vcmask 220160
      %v443 = vsel %vm441, %v398, 0
      %v446 = vsel %vm441, %v399, 0
      %v449 = vsel %vm441, %v400, 0
      %v452 = vsel %vm441, %v401, 0
      %v455 = vsel %vm441, %v402, 0
      %v458 = vsel %vm441, %v403, 0
      %v461 = vsel %vm441, %v404, 0
      %v464 = vsel %vm441, %v405, 0
      %v467 = vsel %vm441, %v406, 0
      %v470 = vsel %vm441, %v407, 0
      %v473 = vsel %vm441, %v408, 0
      %v476 = vsel %vm441, %v409, 0
      %v479 = vsel %vm441, %v410, 0
      %v482 = vsel %vm441, %v411, 0
      %v485 = vsel %vm441, %v412, 0
      %v488 = vsel %vm441, %v413, 0
      %v491 = vsel %vm441, %v414, 0
      %v494 = vsel %vm441, %v415, 0
      %v497 = vsel %vm441, %v416, 0
      %v500 = vsel %vm441, %v417, 0
      %v503 = vsel %vm441, %v418, 0
      %v506 = vsel %vm441, %v419, 0
      %v509 = vsel %vm441, %v420, 0
      %v512 = vsel %vm441, %v421, 0
      %v515 = vsel %vm441, %v422, 0
      %v518 = vsel %vm441, %v423, 0
      %v521 = vsel %vm441, %v424, 0
      %v524 = vsel %vm441, %v425, 0
      %v527 = vsel %vm441, %v426, 0
      %v530 = vsel %vm441, %v427, 0
      %v533 = vsel %vm441, %v428, 0
      %v536 = vsel %vm441, %v429, 0
      %vm538 = vcmask 1044480
      %vm539 = vcmask 1045504
      %v540 = vsel %vm538, 4294967295, 65535
      %v541 = vsel %vm539, %v540, 0
      %v543 = vand.u32 %v439, %v541
      %545 = vmatpush.bf16.msra.mxu0 0
      %546 = vmatpush.bf16.msra.mxu0 0
      %547 = vmatpush.bf16.msra.mxu0 0
      %548 = vmatpush.bf16.msra.mxu0 0
      %549 = vmatpush.bf16.msra.mxu0 0
      %550 = vmatpush.bf16.msra.mxu0 0
      %551 = vmatpush.bf16.msra.mxu0 %v543
      %552 = vmatpush.bf16.msra.mxu0 %v438
      %553 = vmatmul.bf16.gmra.mxu0 %v443
      %v554 = vpop.f32.mrf.mxu0
      %v555 = vadd.f32 0.0, %v554
      %v556 = vpop.f32.mrf.mxu0
      %v557 = vadd.f32 0.0, %v556
      %558 = vmatmul.bf16.gmra.mxu0 %v446
      %v559 = vpop.f32.mrf.mxu0
      %v560 = vadd.f32 0.0, %v559
      %v561 = vpop.f32.mrf.mxu0
      %v562 = vadd.f32 0.0, %v561
      %563 = vmatmul.bf16.gmra.mxu0 %v449
      %v564 = vpop.f32.mrf.mxu0
      %v565 = vadd.f32 0.0, %v564
      %v566 = vpop.f32.mrf.mxu0
      %v567 = vadd.f32 0.0, %v566
      %568 = vmatmul.bf16.gmra.mxu0 %v452
      %v569 = vpop.f32.mrf.mxu0
      %v570 = vadd.f32 0.0, %v569
      %v571 = vpop.f32.mrf.mxu0
      %v572 = vadd.f32 0.0, %v571
      %573 = vmatmul.bf16.gmra.mxu0 %v455
      %v574 = vpop.f32.mrf.mxu0
      %v575 = vadd.f32 0.0, %v574
      %v576 = vpop.f32.mrf.mxu0
      %v577 = vadd.f32 0.0, %v576
      %578 = vmatmul.bf16.gmra.mxu0 %v458
      %v579 = vpop.f32.mrf.mxu0
      %v580 = vadd.f32 0.0, %v579
      %v581 = vpop.f32.mrf.mxu0
      %v582 = vadd.f32 0.0, %v581
      %583 = vmatmul.bf16.gmra.mxu0 %v461
      %v584 = vpop.f32.mrf.mxu0
      %v585 = vadd.f32 0.0, %v584
      %v586 = vpop.f32.mrf.mxu0
      %v587 = vadd.f32 0.0, %v586
      %588 = vmatmul.bf16.gmra.mxu0 %v464
      %v589 = vpop.f32.mrf.mxu0
      %v590 = vadd.f32 0.0, %v589
      %v591 = vpop.f32.mrf.mxu0
      %v592 = vadd.f32 0.0, %v591
      %593 = vmatmul.bf16.gmra.mxu0 %v467
      %v594 = vpop.f32.mrf.mxu0
      %v595 = vadd.f32 0.0, %v594
      %v596 = vpop.f32.mrf.mxu0
      %v597 = vadd.f32 0.0, %v596
      %598 = vmatmul.bf16.gmra.mxu0 %v470
      %v599 = vpop.f32.mrf.mxu0
      %v600 = vadd.f32 0.0, %v599
      %v601 = vpop.f32.mrf.mxu0
      %v602 = vadd.f32 0.0, %v601
      %603 = vmatmul.bf16.gmra.mxu0 %v473
      %v604 = vpop.f32.mrf.mxu0
      %v605 = vadd.f32 0.0, %v604
      %v606 = vpop.f32.mrf.mxu0
      %v607 = vadd.f32 0.0, %v606
      %608 = vmatmul.bf16.gmra.mxu0 %v476
      %v609 = vpop.f32.mrf.mxu0
      %v610 = vadd.f32 0.0, %v609
      %v611 = vpop.f32.mrf.mxu0
      %v612 = vadd.f32 0.0, %v611
      %613 = vmatmul.bf16.gmra.mxu0 %v479
      %v614 = vpop.f32.mrf.mxu0
      %v615 = vadd.f32 0.0, %v614
      %v616 = vpop.f32.mrf.mxu0
      %v617 = vadd.f32 0.0, %v616
      %618 = vmatmul.bf16.gmra.mxu0 %v482
      %v619 = vpop.f32.mrf.mxu0
      %v620 = vadd.f32 0.0, %v619
      %v621 = vpop.f32.mrf.mxu0
      %v622 = vadd.f32 0.0, %v621
      %623 = vmatmul.bf16.gmra.mxu0 %v485
      %v624 = vpop.f32.mrf.mxu0
      %v625 = vadd.f32 0.0, %v624
      %v626 = vpop.f32.mrf.mxu0
      %v627 = vadd.f32 0.0, %v626
      %628 = vmatmul.bf16.gmra.mxu0 %v488
      %v629 = vpop.f32.mrf.mxu0
      %v630 = vadd.f32 0.0, %v629
      %v631 = vpop.f32.mrf.mxu0
      %v632 = vadd.f32 0.0, %v631
      %633 = vmatmul.bf16.gmra.mxu0 %v491
      %v634 = vpop.f32.mrf.mxu0
      %v635 = vadd.f32 0.0, %v634
      %v636 = vpop.f32.mrf.mxu0
      %v637 = vadd.f32 0.0, %v636
      %638 = vmatmul.bf16.gmra.mxu0 %v494
      %v639 = vpop.f32.mrf.mxu0
      %v640 = vadd.f32 0.0, %v639
      %v641 = vpop.f32.mrf.mxu0
      %v642 = vadd.f32 0.0, %v641
      %643 = vmatmul.bf16.gmra.mxu0 %v497
      %v644 = vpop.f32.mrf.mxu0
      %v645 = vadd.f32 0.0, %v644
      %v646 = vpop.f32.mrf.mxu0
      %v647 = vadd.f32 0.0, %v646
      %648 = vmatmul.bf16.gmra.mxu0 %v500
      %v649 = vpop.f32.mrf.mxu0
      %v650 = vadd.f32 0.0, %v649
      %v651 = vpop.f32.mrf.mxu0
      %v652 = vadd.f32 0.0, %v651
      %653 = vmatmul.bf16.gmra.mxu0 %v503
      %v654 = vpop.f32.mrf.mxu0
      %v655 = vadd.f32 0.0, %v654
      %v656 = vpop.f32.mrf.mxu0
      %v657 = vadd.f32 0.0, %v656
      %658 = vmatmul.bf16.gmra.mxu0 %v506
      %v659 = vpop.f32.mrf.mxu0
      %v660 = vadd.f32 0.0, %v659
      %v661 = vpop.f32.mrf.mxu0
      %v662 = vadd.f32 0.0, %v661
      %663 = vmatmul.bf16.gmra.mxu0 %v509
      %v664 = vpop.f32.mrf.mxu0
      %v665 = vadd.f32 0.0, %v664
      %v666 = vpop.f32.mrf.mxu0
      %v667 = vadd.f32 0.0, %v666
      %668 = vmatmul.bf16.gmra.mxu0 %v512
      %v669 = vpop.f32.mrf.mxu0
      %v670 = vadd.f32 0.0, %v669
      %v671 = vpop.f32.mrf.mxu0
      %v672 = vadd.f32 0.0, %v671
      %673 = vmatmul.bf16.gmra.mxu0 %v515
      %v674 = vpop.f32.mrf.mxu0
      %v675 = vadd.f32 0.0, %v674
      %v676 = vpop.f32.mrf.mxu0
      %v677 = vadd.f32 0.0, %v676
      %678 = vmatmul.bf16.gmra.mxu0 %v518
      %v679 = vpop.f32.mrf.mxu0
      %v680 = vadd.f32 0.0, %v679
      %v681 = vpop.f32.mrf.mxu0
      %v682 = vadd.f32 0.0, %v681
      %683 = vmatmul.bf16.gmra.mxu0 %v521
      %v684 = vpop.f32.mrf.mxu0
      %v685 = vadd.f32 0.0, %v684
      %v686 = vpop.f32.mrf.mxu0
      %v687 = vadd.f32 0.0, %v686
      %688 = vmatmul.bf16.gmra.mxu0 %v524
      %v689 = vpop.f32.mrf.mxu0
      %v690 = vadd.f32 0.0, %v689
      %v691 = vpop.f32.mrf.mxu0
      %v692 = vadd.f32 0.0, %v691
      %693 = vmatmul.bf16.gmra.mxu0 %v527
      %v694 = vpop.f32.mrf.mxu0
      %v695 = vadd.f32 0.0, %v694
      %v696 = vpop.f32.mrf.mxu0
      %v697 = vadd.f32 0.0, %v696
      %698 = vmatmul.bf16.gmra.mxu0 %v530
      %v699 = vpop.f32.mrf.mxu0
      %v700 = vadd.f32 0.0, %v699
      %v701 = vpop.f32.mrf.mxu0
      %v702 = vadd.f32 0.0, %v701
      %703 = vmatmul.bf16.gmra.mxu0 %v533
      %v704 = vpop.f32.mrf.mxu0
      %v705 = vadd.f32 0.0, %v704
      %v706 = vpop.f32.mrf.mxu0
      %v707 = vadd.f32 0.0, %v706
      %708 = vmatmul.bf16.gmra.mxu0 %v536
      %v709 = vpop.f32.mrf.mxu0
      %v710 = vadd.f32 0.0, %v709
      %v711 = vpop.f32.mrf.mxu0
      %v712 = vadd.f32 0.0, %v711
      %713 = vdwg.mxu0
      %v714 = vld [vmem:[%s2] sm:$0x1]
      %v716 = vperm.slane %v714, 0
      %v718 = vmul.f32 %v555, %v716
      %v719 = vmul.f32 %v557, %v716
      %v720 = vmul.f32 %v560, %v716
      %v721 = vmul.f32 %v562, %v716
      %v722 = vmul.f32 %v565, %v716
      %v723 = vmul.f32 %v567, %v716
      %v724 = vmul.f32 %v570, %v716
      %v725 = vmul.f32 %v572, %v716
      %v726 = vmul.f32 %v575, %v716
      %v727 = vmul.f32 %v577, %v716
      %v728 = vmul.f32 %v580, %v716
      %v729 = vmul.f32 %v582, %v716
      %v730 = vmul.f32 %v585, %v716
      %v731 = vmul.f32 %v587, %v716
      %v732 = vmul.f32 %v590, %v716
      %v733 = vmul.f32 %v592, %v716
      %v734 = vmul.f32 %v595, %v716
      %v735 = vmul.f32 %v597, %v716
      %v736 = vmul.f32 %v600, %v716
      %v737 = vmul.f32 %v602, %v716
      %v738 = vmul.f32 %v605, %v716
      %v739 = vmul.f32 %v607, %v716
      %v740 = vmul.f32 %v610, %v716
      %v741 = vmul.f32 %v612, %v716
      %v742 = vmul.f32 %v615, %v716
      %v743 = vmul.f32 %v617, %v716
      %v744 = vmul.f32 %v620, %v716
      %v745 = vmul.f32 %v622, %v716
      %v746 = vmul.f32 %v625, %v716
      %v747 = vmul.f32 %v627, %v716
      %v748 = vmul.f32 %v630, %v716
      %v749 = vmul.f32 %v632, %v716
      %v750 = vmul.f32 %v635, %v716
      %v751 = vmul.f32 %v637, %v716
      %v752 = vmul.f32 %v640, %v716
      %v753 = vmul.f32 %v642, %v716
      %v754 = vmul.f32 %v645, %v716
      %v755 = vmul.f32 %v647, %v716
      %v756 = vmul.f32 %v650, %v716
      %v757 = vmul.f32 %v652, %v716
      %v758 = vmul.f32 %v655, %v716
      %v759 = vmul.f32 %v657, %v716
      %v760 = vmul.f32 %v660, %v716
      %v761 = vmul.f32 %v662, %v716
      %v762 = vmul.f32 %v665, %v716
      %v763 = vmul.f32 %v667, %v716
      %v764 = vmul.f32 %v670, %v716
      %v765 = vmul.f32 %v672, %v716
      %v766 = vmul.f32 %v675, %v716
      %v767 = vmul.f32 %v677, %v716
      %v768 = vmul.f32 %v680, %v716
      %v769 = vmul.f32 %v682, %v716
      %v770 = vmul.f32 %v685, %v716
      %v771 = vmul.f32 %v687, %v716
      %v772 = vmul.f32 %v690, %v716
      %v773 = vmul.f32 %v692, %v716
      %v774 = vmul.f32 %v695, %v716
      %v775 = vmul.f32 %v697, %v716
      %v776 = vmul.f32 %v700, %v716
      %v777 = vmul.f32 %v702, %v716
      %v778 = vmul.f32 %v705, %v716
      %v779 = vmul.f32 %v707, %v716
      %v780 = vmul.f32 %v710, %v716
      %v781 = vmul.f32 %v712, %v716
      %v782 = vld [vmem:[%s3] sm:$0x1]
      %v784 = vperm.slane %v782, 0
      %v786 = vadd.f32 %v718, %v784
      %v787 = vadd.f32 %v719, %v784
      %v788 = vadd.f32 %v720, %v784
      %v789 = vadd.f32 %v721, %v784
      %v790 = vadd.f32 %v722, %v784
      %v791 = vadd.f32 %v723, %v784
      %v792 = vadd.f32 %v724, %v784
      %v793 = vadd.f32 %v725, %v784
      %v794 = vadd.f32 %v726, %v784
      %v795 = vadd.f32 %v727, %v784
      %v796 = vadd.f32 %v728, %v784
      %v797 = vadd.f32 %v729, %v784
      %v798 = vadd.f32 %v730, %v784
      %v799 = vadd.f32 %v731, %v784
      %v800 = vadd.f32 %v732, %v784
      %v801 = vadd.f32 %v733, %v784
      %v802 = vadd.f32 %v734, %v784
      %v803 = vadd.f32 %v735, %v784
      %v804 = vadd.f32 %v736, %v784
      %v805 = vadd.f32 %v737, %v784
      %v806 = vadd.f32 %v738, %v784
      %v807 = vadd.f32 %v739, %v784
      %v808 = vadd.f32 %v740, %v784
      %v809 = vadd.f32 %v741, %v784
      %v810 = vadd.f32 %v742, %v784
      %v811 = vadd.f32 %v743, %v784
      %v812 = vadd.f32 %v744, %v784
      %v813 = vadd.f32 %v745, %v784
      %v814 = vadd.f32 %v746, %v784
      %v815 = vadd.f32 %v747, %v784
      %v816 = vadd.f32 %v748, %v784
      %v817 = vadd.f32 %v749, %v784
      %v818 = vadd.f32 %v750, %v784
      %v819 = vadd.f32 %v751, %v784
      %v820 = vadd.f32 %v752, %v784
      %v821 = vadd.f32 %v753, %v784
      %v822 = vadd.f32 %v754, %v784
      %v823 = vadd.f32 %v755, %v784
      %v824 = vadd.f32 %v756, %v784
      %v825 = vadd.f32 %v757, %v784
      %v826 = vadd.f32 %v758, %v784
      %v827 = vadd.f32 %v759, %v784
      %v828 = vadd.f32 %v760, %v784
      %v829 = vadd.f32 %v761, %v784
      %v830 = vadd.f32 %v762, %v784
      %v831 = vadd.f32 %v763, %v784
      %v832 = vadd.f32 %v764, %v784
      %v833 = vadd.f32 %v765, %v784
      %v834 = vadd.f32 %v766, %v784
      %v835 = vadd.f32 %v767, %v784
      %v836 = vadd.f32 %v768, %v784
      %v837 = vadd.f32 %v769, %v784
      %v838 = vadd.f32 %v770, %v784
      %v839 = vadd.f32 %v771, %v784
      %v840 = vadd.f32 %v772, %v784
      %v841 = vadd.f32 %v773, %v784
      %v842 = vadd.f32 %v774, %v784
      %v843 = vadd.f32 %v775, %v784
      %v844 = vadd.f32 %v776, %v784
      %v845 = vadd.f32 %v777, %v784
      %v846 = vadd.f32 %v778, %v784
      %v847 = vadd.f32 %v779, %v784
      %v848 = vadd.f32 %v780, %v784
      %v849 = vadd.f32 %v781, %v784
      %v850 = vmax.f32 %v786, 0.0
      %v851 = vmax.f32 %v787, 0.0
      %v852 = vmax.f32 %v788, 0.0
      %v853 = vmax.f32 %v789, 0.0
      %v854 = vmax.f32 %v790, 0.0
      %v855 = vmax.f32 %v791, 0.0
      %v856 = vmax.f32 %v792, 0.0
      %v857 = vmax.f32 %v793, 0.0
      %v858 = vmax.f32 %v794, 0.0
      %v859 = vmax.f32 %v795, 0.0
      %v860 = vmax.f32 %v796, 0.0
      %v861 = vmax.f32 %v797, 0.0
      %v862 = vmax.f32 %v798, 0.0
      %v863 = vmax.f32 %v799, 0.0
      %v864 = vmax.f32 %v800, 0.0
      %v865 = vmax.f32 %v801, 0.0
      %v866 = vmax.f32 %v802, 0.0
      %v867 = vmax.f32 %v803, 0.0
      %v868 = vmax.f32 %v804, 0.0
      %v869 = vmax.f32 %v805, 0.0
      %v870 = vmax.f32 %v806, 0.0
      %v871 = vmax.f32 %v807, 0.0
      %v872 = vmax.f32 %v808, 0.0
      %v873 = vmax.f32 %v809, 0.0
      %v874 = vmax.f32 %v810, 0.0
      %v875 = vmax.f32 %v811, 0.0
      %v876 = vmax.f32 %v812, 0.0
      %v877 = vmax.f32 %v813, 0.0
      %v878 = vmax.f32 %v814, 0.0
      %v879 = vmax.f32 %v815, 0.0
      %v880 = vmax.f32 %v816, 0.0
      %v881 = vmax.f32 %v817, 0.0
      %v882 = vmax.f32 %v818, 0.0
      %v883 = vmax.f32 %v819, 0.0
      %v884 = vmax.f32 %v820, 0.0
      %v885 = vmax.f32 %v821, 0.0
      %v886 = vmax.f32 %v822, 0.0
      %v887 = vmax.f32 %v823, 0.0
      %v888 = vmax.f32 %v824, 0.0
      %v889 = vmax.f32 %v825, 0.0
      %v890 = vmax.f32 %v826, 0.0
      %v891 = vmax.f32 %v827, 0.0
      %v892 = vmax.f32 %v828, 0.0
      %v893 = vmax.f32 %v829, 0.0
      %v894 = vmax.f32 %v830, 0.0
      %v895 = vmax.f32 %v831, 0.0
      %v896 = vmax.f32 %v832, 0.0
      %v897 = vmax.f32 %v833, 0.0
      %v898 = vmax.f32 %v834, 0.0
      %v899 = vmax.f32 %v835, 0.0
      %v900 = vmax.f32 %v836, 0.0
      %v901 = vmax.f32 %v837, 0.0
      %v902 = vmax.f32 %v838, 0.0
      %v903 = vmax.f32 %v839, 0.0
      %v904 = vmax.f32 %v840, 0.0
      %v905 = vmax.f32 %v841, 0.0
      %v906 = vmax.f32 %v842, 0.0
      %v907 = vmax.f32 %v843, 0.0
      %v908 = vmax.f32 %v844, 0.0
      %v909 = vmax.f32 %v845, 0.0
      %v910 = vmax.f32 %v846, 0.0
      %v911 = vmax.f32 %v847, 0.0
      %v912 = vmax.f32 %v848, 0.0
      %v913 = vmax.f32 %v849, 0.0
      %v914 = vpack.c.bf16 %v850, %v850
      %v915 = vpack.c.bf16 %v851, %v851
      %v916 = vpack.c.bf16 %v852, %v852
      %v917 = vpack.c.bf16 %v853, %v853
      %v918 = vpack.c.bf16 %v854, %v854
      %v919 = vpack.c.bf16 %v855, %v855
      %v920 = vpack.c.bf16 %v856, %v856
      %v921 = vpack.c.bf16 %v857, %v857
      %v922 = vpack.c.bf16 %v858, %v858
      %v923 = vpack.c.bf16 %v859, %v859
      %v924 = vpack.c.bf16 %v860, %v860
      %v925 = vpack.c.bf16 %v861, %v861
      %v926 = vpack.c.bf16 %v862, %v862
      %v927 = vpack.c.bf16 %v863, %v863
      %v928 = vpack.c.bf16 %v864, %v864
      %v929 = vpack.c.bf16 %v865, %v865
      %v930 = vpack.c.bf16 %v866, %v866
      %v931 = vpack.c.bf16 %v867, %v867
      %v932 = vpack.c.bf16 %v868, %v868
      %v933 = vpack.c.bf16 %v869, %v869
      %v934 = vpack.c.bf16 %v870, %v870
      %v935 = vpack.c.bf16 %v871, %v871
      %v936 = vpack.c.bf16 %v872, %v872
      %v937 = vpack.c.bf16 %v873, %v873
      %v938 = vpack.c.bf16 %v874, %v874
      %v939 = vpack.c.bf16 %v875, %v875
      %v940 = vpack.c.bf16 %v876, %v876
      %v941 = vpack.c.bf16 %v877, %v877
      %v942 = vpack.c.bf16 %v878, %v878
      %v943 = vpack.c.bf16 %v879, %v879
      %v944 = vpack.c.bf16 %v880, %v880
      %v945 = vpack.c.bf16 %v881, %v881
      %v946 = vpack.c.bf16 %v882, %v882
      %v947 = vpack.c.bf16 %v883, %v883
      %v948 = vpack.c.bf16 %v884, %v884
      %v949 = vpack.c.bf16 %v885, %v885
      %v950 = vpack.c.bf16 %v886, %v886
      %v951 = vpack.c.bf16 %v887, %v887
      %v952 = vpack.c.bf16 %v888, %v888
      %v953 = vpack.c.bf16 %v889, %v889
      %v954 = vpack.c.bf16 %v890, %v890
      %v955 = vpack.c.bf16 %v891, %v891
      %v956 = vpack.c.bf16 %v892, %v892
      %v957 = vpack.c.bf16 %v893, %v893
      %v958 = vpack.c.bf16 %v894, %v894
      %v959 = vpack.c.bf16 %v895, %v895
      %v960 = vpack.c.bf16 %v896, %v896
      %v961 = vpack.c.bf16 %v897, %v897
      %v962 = vpack.c.bf16 %v898, %v898
      %v963 = vpack.c.bf16 %v899, %v899
      %v964 = vpack.c.bf16 %v900, %v900
      %v965 = vpack.c.bf16 %v901, %v901
      %v966 = vpack.c.bf16 %v902, %v902
      %v967 = vpack.c.bf16 %v903, %v903
      %v968 = vpack.c.bf16 %v904, %v904
      %v969 = vpack.c.bf16 %v905, %v905
      %v970 = vpack.c.bf16 %v906, %v906
      %v971 = vpack.c.bf16 %v907, %v907
      %v972 = vpack.c.bf16 %v908, %v908
      %v973 = vpack.c.bf16 %v909, %v909
      %v974 = vpack.c.bf16 %v910, %v910
      %v975 = vpack.c.bf16 %v911, %v911
      %v976 = vpack.c.bf16 %v912, %v912
      %v977 = vpack.c.bf16 %v913, %v913
      %vm978 = vcmask 125952
      %979 = vst.msk [vmem:[%s199] sm:$0xf] %vm978, %v914
      %980 = vst.msk [vmem:[%s199 + $0x4] sm:$0xf] %vm978, %v915
      %981 = vst.msk [vmem:[%s199 + $0x8] sm:$0xf] %vm978, %v916
      %982 = vst.msk [vmem:[%s199 + $0xc] sm:$0xf] %vm978, %v917
      %983 = vst.msk [vmem:[%s199 + $0x10] sm:$0xf] %vm978, %v918
      %984 = vst.msk [vmem:[%s199 + $0x14] sm:$0xf] %vm978, %v919
      %985 = vst.msk [vmem:[%s199 + $0x18] sm:$0xf] %vm978, %v920
      %986 = vst.msk [vmem:[%s199 + $0x1c] sm:$0xf] %vm978, %v921
      %987 = vst.msk [vmem:[%s199 + $0x20] sm:$0xf] %vm978, %v922
      %988 = vst.msk [vmem:[%s199 + $0x24] sm:$0xf] %vm978, %v923
      %989 = vst.msk [vmem:[%s199 + $0x28] sm:$0xf] %vm978, %v924
      %990 = vst.msk [vmem:[%s199 + $0x2c] sm:$0xf] %vm978, %v925
      %991 = vst.msk [vmem:[%s199 + $0x30] sm:$0xf] %vm978, %v926
      %992 = vst.msk [vmem:[%s199 + $0x34] sm:$0xf] %vm978, %v927
      %993 = vst.msk [vmem:[%s199 + $0x38] sm:$0xf] %vm978, %v928
      %994 = vst.msk [vmem:[%s199 + $0x3c] sm:$0xf] %vm978, %v929
      %995 = vst.msk [vmem:[%s199 + $0x40] sm:$0xf] %vm978, %v930
      %996 = vst.msk [vmem:[%s199 + $0x44] sm:$0xf] %vm978, %v931
      %997 = vst.msk [vmem:[%s199 + $0x48] sm:$0xf] %vm978, %v932
      %998 = vst.msk [vmem:[%s199 + $0x4c] sm:$0xf] %vm978, %v933
      %999 = vst.msk [vmem:[%s199 + $0x50] sm:$0xf] %vm978, %v934
      %1000 = vst.msk [vmem:[%s199 + $0x54] sm:$0xf] %vm978, %v935
      %1001 = vst.msk [vmem:[%s199 + $0x58] sm:$0xf] %vm978, %v936
      %1002 = vst.msk [vmem:[%s199 + $0x5c] sm:$0xf] %vm978, %v937
      %1003 = vst.msk [vmem:[%s199 + $0x60] sm:$0xf] %vm978, %v938
      %1004 = vst.msk [vmem:[%s199 + $0x64] sm:$0xf] %vm978, %v939
      %1005 = vst.msk [vmem:[%s199 + $0x68] sm:$0xf] %vm978, %v940
      %1006 = vst.msk [vmem:[%s199 + $0x6c] sm:$0xf] %vm978, %v941
      %1007 = vst.msk [vmem:[%s199 + $0x70] sm:$0xf] %vm978, %v942
      %1008 = vst.msk [vmem:[%s199 + $0x74] sm:$0xf] %vm978, %v943
      %1009 = vst.msk [vmem:[%s199 + $0x78] sm:$0xf] %vm978, %v944
      %1010 = vst.msk [vmem:[%s199 + $0x7c] sm:$0xf] %vm978, %v945
      %1011 = vst.msk [vmem:[%s199 + $0x80] sm:$0xf] %vm978, %v946
      %1012 = vst.msk [vmem:[%s199 + $0x84] sm:$0xf] %vm978, %v947
      %1013 = vst.msk [vmem:[%s199 + $0x88] sm:$0xf] %vm978, %v948
      %1014 = vst.msk [vmem:[%s199 + $0x8c] sm:$0xf] %vm978, %v949
      %1015 = vst.msk [vmem:[%s199 + $0x90] sm:$0xf] %vm978, %v950
      %1016 = vst.msk [vmem:[%s199 + $0x94] sm:$0xf] %vm978, %v951
      %1017 = vst.msk [vmem:[%s199 + $0x98] sm:$0xf] %vm978, %v952
      %1018 = vst.msk [vmem:[%s199 + $0x9c] sm:$0xf] %vm978, %v953
      %1019 = vst.msk [vmem:[%s199 + $0xa0] sm:$0xf] %vm978, %v954
      %1020 = vst.msk [vmem:[%s199 + $0xa4] sm:$0xf] %vm978, %v955
      %1021 = vst.msk [vmem:[%s199 + $0xa8] sm:$0xf] %vm978, %v956
      %1022 = vst.msk [vmem:[%s199 + $0xac] sm:$0xf] %vm978, %v957
      %1023 = vst.msk [vmem:[%s199 + $0xb0] sm:$0xf] %vm978, %v958
      %1024 = vst.msk [vmem:[%s199 + $0xb4] sm:$0xf] %vm978, %v959
      %1025 = vst.msk [vmem:[%s199 + $0xb8] sm:$0xf] %vm978, %v960
      %1026 = vst.msk [vmem:[%s199 + $0xbc] sm:$0xf] %vm978, %v961
      %1027 = vst.msk [vmem:[%s199 + $0xc0] sm:$0xf] %vm978, %v962
      %1028 = vst.msk [vmem:[%s199 + $0xc4] sm:$0xf] %vm978, %v963
      %1029 = vst.msk [vmem:[%s199 + $0xc8] sm:$0xf] %vm978, %v964
      %1030 = vst.msk [vmem:[%s199 + $0xcc] sm:$0xf] %vm978, %v965
      %1031 = vst.msk [vmem:[%s199 + $0xd0] sm:$0xf] %vm978, %v966
      %1032 = vst.msk [vmem:[%s199 + $0xd4] sm:$0xf] %vm978, %v967
      %1033 = vst.msk [vmem:[%s199 + $0xd8] sm:$0xf] %vm978, %v968
      %1034 = vst.msk [vmem:[%s199 + $0xdc] sm:$0xf] %vm978, %v969
      %1035 = vst.msk [vmem:[%s199 + $0xe0] sm:$0xf] %vm978, %v970
      %1036 = vst.msk [vmem:[%s199 + $0xe4] sm:$0xf] %vm978, %v971
      %1037 = vst.msk [vmem:[%s199 + $0xe8] sm:$0xf] %vm978, %v972
      %1038 = vst.msk [vmem:[%s199 + $0xec] sm:$0xf] %vm978, %v973
      %1039 = vst.msk [vmem:[%s199 + $0xf0] sm:$0xf] %vm978, %v974
      %1040 = vst.msk [vmem:[%s199 + $0xf4] sm:$0xf] %vm978, %v975
      %1041 = vst.msk [vmem:[%s199 + $0xf8] sm:$0xf] %vm978, %v976
      %1042 = vst.msk [vmem:[%s199 + $0xfc] sm:$0xf] %vm978, %v977
      %s1043 = smul.u32 64, %s15
      %p1044 = scmp.lt.s32.totalorder %s1043, 127
      %s1045 = scalar_select %p1044, %s1043, 127
      %s1046 = smul.addr %s1045, 4
      %s1047 = scalar_lea.vmem %s4, %s1046
      // Predicated region
      $region37: #{matmul_fused.1} parent=35 // pred_check
        %p1048 = pneg %p122
      $region38: #{matmul_fused.1} parent=35 // pred_check_branch
        %1050 = sbr.rel (%p1048) target = $region40
      $region39: #{matmul_fused.1} parent=35 // pred_region
        %s1051 = smul.u32 64, %s15
      $region40: #{matmul_fused.1} parent=35 // pred_fallthru
        _
    $region36: #{matmul_fused.1} parent=5 // pred_fallthru
      _
    %p1052 = scmp.le.s32.totalorder 2, %s10
    // Predicated region
    $region41: #{matmul_fused.1} parent=5 // pred_check
      %p1053 = pneg %p1052
    $region42: #{matmul_fused.1} parent=5 // pred_check_branch
      %1055 = sbr.rel (%p1053) target = $region44
    $region43: #{matmul_fused.1} parent=5 // pred_region
      %s1056 = ssub.s32 %s10, 2
      // Predicated region
      $region45: #{matmul_fused.1} parent=43 // pred_check
        %p1057 = pneg %p128
      $region46: #{matmul_fused.1} parent=43 // pred_check_branch
        %1059 = sbr.rel (%p1057) target = $region48
      $region47: #{matmul_fused.1} parent=43 // pred_region
        %s1060 = smul.u32 64, %s16
        %p1061 = scmp.lt.s32.totalorder %s1060, 127
        %s1062 = scalar_select %p1061, %s1060, 127
        %s1063 = smul.addr %s1062, 4
        %s1064 = scalar_lea.vmem %s4, %s1063
      $region48: #{matmul_fused.1} parent=43 // pred_fallthru
        _
    $region44: #{matmul_fused.1} parent=5 // pred_fallthru
      _
  $region6: #{matmul_fused.1} parent=0 // loop_footer
    %s14 = sadd.s32 1, %s10
  $region7: #{matmul_fused.1} parent=0 // loop_footer_branch
    %9 = sbr.rel target = $region3
  $region8: #{matmul_fused.1} parent=0 // loop_exit
    _

</llo_original>
